<compile_context>
chip_gen: v5e
topology: v5e:2x2
jax: 0.10.0
libtpu: 0.0.40
codegen_flags: <defaults>
</compile_context>

<pallas_src>
import functools

import jax
import jax.numpy as jnp
from jax.experimental import pallas as pl
from jax.experimental.pallas import tpu as pltpu


# ---------------------------------------------------------------------------
# Tiled single-layer kernel:  H = act(A_hat @ (X @ W) + b)
# ---------------------------------------------------------------------------
def _gcn_layer_tiled_kernel(a_ref, x_ref, w_ref, b_ref, o_ref, acc_ref, *,
                            activation, num_valid):
    k = pl.program_id(1)

    @pl.when(k == 0)
    def _():
        acc_ref[...] = jnp.zeros_like(acc_ref)

    # Per-reduction-step slab of X@W (cheap: TK x F_in x F_out), then the
    # dominant A_hat matmul in bf16 with f32 accumulation on the MXU.
    xw = jnp.dot(x_ref[...], w_ref[...], preferred_element_type=jnp.float32)
    acc_ref[...] += jnp.dot(a_ref[...], xw.astype(jnp.bfloat16),
                            preferred_element_type=jnp.float32)

    @pl.when(k == pl.num_programs(1) - 1)
    def _():
        h = acc_ref[...] + b_ref[...]          # bias only once, at the last k step
        if activation == "relu":
            h = jnp.maximum(h, 0.0)
        elif activation == "log_softmax":
            if num_valid is not None and num_valid < h.shape[1]:
                col = jax.lax.broadcasted_iota(jnp.int32, h.shape, 1)
                h = jnp.where(col < num_valid, h, -jnp.inf)
            m = jnp.max(h, axis=1, keepdims=True)
            z = h - m
            h = z - jnp.log(jnp.sum(jnp.exp(z), axis=1, keepdims=True))
        o_ref[...] = h.astype(o_ref.dtype)


def gcn_layer_tiled(a_hat_bf16, x, w, b, *, activation, num_valid=None,
                    tm=256, tk=256):
    n = a_hat_bf16.shape[0]
    f_in = x.shape[1]
    f_out = w.shape[1]
    kernel = functools.partial(_gcn_layer_tiled_kernel,
                               activation=activation, num_valid=num_valid)
    return pl.pallas_call(
        kernel,
        out_shape=jax.ShapeDtypeStruct((n, f_out), jnp.float32),
        grid_spec=pltpu.PrefetchScalarGridSpec(
            num_scalar_prefetch=0,
            grid=(n // tm, n // tk),                 # reduction axis last
            in_specs=[
                pl.BlockSpec((tm, tk), lambda i, k: (i, k)),      # A_hat tile
                pl.BlockSpec((tk, f_in), lambda i, k: (k, 0)),    # X slab
                pl.BlockSpec((f_in, f_out), lambda i, k: (0, 0)),  # W (whole)
                pl.BlockSpec((1, f_out), lambda i, k: (0, 0)),     # b (whole)
            ],
            out_specs=pl.BlockSpec((tm, f_out), lambda i, k: (i, 0)),
            scratch_shapes=[pltpu.VMEM((tm, f_out), jnp.float32)],
        ),
        compiler_params=pltpu.CompilerParams(
            dimension_semantics=("parallel", "arbitrary"),
            vmem_limit_bytes=32 * 1024 * 1024,
        ),
    )(a_hat_bf16, x, w, b)


# ---------------------------------------------------------------------------
# Fully fused 3-layer kernel for small graphs (everything resident in VMEM).
# ---------------------------------------------------------------------------
def _gcn_fused3_kernel(a_ref, x_ref, w1_ref, b1_ref, w2_ref, b2_ref,
                       w3_ref, b3_ref, o_ref, *, num_classes):
    a = a_ref[...]                                           # (N, N) bf16

    # Layer 1 + ReLU   (dropout: eval-mode identity)
    xw = jnp.dot(x_ref[...], w1_ref[...], preferred_element_type=jnp.float32)
    h = jnp.dot(a, xw.astype(jnp.bfloat16),
                preferred_element_type=jnp.float32) + b1_ref[...]
    h = jnp.maximum(h, 0.0)

    # Layer 2 + ReLU   (dropout: eval-mode identity)
    xw = jnp.dot(h, w2_ref[...], preferred_element_type=jnp.float32)
    h = jnp.dot(a, xw.astype(jnp.bfloat16),
                preferred_element_type=jnp.float32) + b2_ref[...]
    h = jnp.maximum(h, 0.0)

    # Layer 3 + masked log_softmax over the real classes (padded lanes -> -inf)
    xw = jnp.dot(h, w3_ref[...], preferred_element_type=jnp.float32)
    h = jnp.dot(a, xw.astype(jnp.bfloat16),
                preferred_element_type=jnp.float32) + b3_ref[...]
    if num_classes < h.shape[1]:
        col = jax.lax.broadcasted_iota(jnp.int32, h.shape, 1)
        h = jnp.where(col < num_classes, h, -jnp.inf)
    m = jnp.max(h, axis=1, keepdims=True)
    z = h - m
    h = z - jnp.log(jnp.sum(jnp.exp(z), axis=1, keepdims=True))
    o_ref[...] = h.astype(o_ref.dtype)


def gcn_fused3(a_hat_bf16, x, w1, b1, w2, b2, w3, b3, *, num_classes):
    n = a_hat_bf16.shape[0]
    c_p = w3.shape[1]
    inputs = (a_hat_bf16, x, w1, b1, w2, b2, w3, b3)
    kernel = functools.partial(_gcn_fused3_kernel, num_classes=num_classes)
    return pl.pallas_call(
        kernel,
        out_shape=jax.ShapeDtypeStruct((n, c_p), jnp.float32),
        grid_spec=pl.GridSpec(
            grid=(1,),
            in_specs=[pl.BlockSpec(arr.shape, lambda i: (0, 0)) for arr in inputs],
            out_specs=pl.BlockSpec((n, c_p), lambda i: (0, 0)),
        ),
        compiler_params=pltpu.CompilerParams(
            dimension_semantics=("arbitrary",),
            vmem_limit_bytes=32 * 1024 * 1024,
        ),
    )(*inputs)


# ---------------------------------------------------------------------------
# Wrapper: padding to lane-dense / tile-aligned shapes + path selection.
# ---------------------------------------------------------------------------
def _round_up(v, m):
    return ((v + m - 1) // m) * m


def _pad2d(x, rows, cols):
    r, c = x.shape
    if rows == r and cols == c:
        return x
    return jnp.pad(x, ((0, rows - r), (0, cols - c)))


def gcn_forward(features, a_hat, params, *, max_fused_nodes=1024, tm=256, tk=256):
    """Mirrors GCN.forward(features, adj) in eval mode."""
    n, f_in = features.shape
    hidden = params["w1"].shape[1]
    c = params["w3"].shape[1]

    f_in_p = _round_up(f_in, 128)        # lane-dense K for the first X@W matmul
    hid_p = _round_up(hidden, 128)
    c_p = _round_up(c, 128)              # lane-dense output stores

    use_fused = n <= max_fused_nodes
    n_p = _round_up(n, 8) if use_fused else _round_up(n, max(tm, tk))

    a_p = _pad2d(a_hat.astype(jnp.float32), n_p, n_p).astype(jnp.bfloat16)
    x_p = _pad2d(features.astype(jnp.float32), n_p, f_in_p)
    w1 = _pad2d(params["w1"], f_in_p, hid_p)
    b1 = _pad2d(params["b1"], 1, hid_p)
    w2 = _pad2d(params["w2"], hid_p, hid_p)
    b2 = _pad2d(params["b2"], 1, hid_p)
    w3 = _pad2d(params["w3"], hid_p, c_p)
    b3 = _pad2d(params["b3"], 1, c_p)

    if use_fused:
        out = gcn_fused3(a_p, x_p, w1, b1, w2, b2, w3, b3, num_classes=c)
    else:
        h = gcn_layer_tiled(a_p, x_p, w1, b1, activation="relu", tm=tm, tk=tk)
        # F.dropout(..., training=False) -> identity
        h = gcn_layer_tiled(a_p, h, w2, b2, activation="relu", tm=tm, tk=tk)
        # F.dropout(..., training=False) -> identity
        out = gcn_layer_tiled(a_p, h, w3, b3, activation="log_softmax",
                              num_valid=c, tm=tm, tk=tk)
    return out[:n, :c]


def normalize_adj(edge_index, num_nodes):
    """Dense D^-1/2 (A + I) D^-1/2 from integer edge_index (2, E).

    Note: assumes an (effectively) undirected edge list, matching PyG's
    gcn_norm behavior on symmetric graphs.
    """
    adj = jnp.zeros((num_nodes, num_nodes), jnp.float32)
    adj = adj.at[edge_index[0], edge_index[1]].set(1.0)
    adj = jnp.maximum(adj, jnp.eye(num_nodes, dtype=jnp.float32))  # self loops
    deg = jnp.sum(adj, axis=1)
    d_inv_sqrt = 1.0 / jnp.sqrt(deg)
    return adj * d_inv_sqrt[:, None] * d_inv_sqrt[None, :]


def glorot(key, shape):
    lim = jnp.sqrt(6.0 / (shape[0] + shape[1]))
    return jax.random.uniform(key, shape, jnp.float32, -lim, lim)


if __name__ == "__main__":
    key = jax.random.PRNGKey(0)
    (k_feat1, k_src1, k_dst1, k_w1, k_w2, k_w3,
     k_feat2, k_src2, k_dst2) = jax.random.split(key, 9)

    INPUT_DIM = 16
    HIDDEN = 128
    OUTPUT_DIM = 8

    params = {
        "w1": glorot(k_w1, (INPUT_DIM, HIDDEN)),
        "b1": jnp.zeros((1, HIDDEN), jnp.float32),
        "w2": glorot(k_w2, (HIDDEN, HIDDEN)),
        "b2": jnp.zeros((1, HIDDEN), jnp.float32),
        "w3": glorot(k_w3, (HIDDEN, OUTPUT_DIM)),
        "b3": jnp.zeros((1, OUTPUT_DIM), jnp.float32),
    }

    # --- small graph: exercises the fully fused single-kernel path ----------
    N1, E1 = 32, 64
    feats1 = jax.random.normal(k_feat1, (N1, INPUT_DIM), jnp.float32)
    edge_index1 = jnp.stack([jax.random.randint(k_src1, (E1,), 0, N1),
                             jax.random.randint(k_dst1, (E1,), 0, N1)], axis=0)
    a_hat1 = normalize_adj(edge_index1, N1)
    out1 = gcn_forward(feats1, a_hat1, params)
    jax.block_until_ready(out1)
    assert out1.shape == (N1, OUTPUT_DIM)
    assert bool(jnp.all(jnp.isfinite(out1)))
    assert bool(jnp.allclose(jnp.exp(out1).sum(axis=1), 1.0, atol=1e-3))

    # --- larger graph: exercises the tiled, double-buffered reduction path --
    N2, E2 = 512, 2048
    feats2 = jax.random.normal(k_feat2, (N2, INPUT_DIM), jnp.float32)
    edge_index2 = jnp.stack([jax.random.randint(k_src2, (E2,), 0, N2),
                             jax.random.randint(k_dst2, (E2,), 0, N2)], axis=0)
    a_hat2 = normalize_adj(edge_index2, N2)
    out2 = gcn_forward(feats2, a_hat2, params, max_fused_nodes=0)
    jax.block_until_ready(out2)
    assert out2.shape == (N2, OUTPUT_DIM)
    assert bool(jnp.all(jnp.isfinite(out2)))
    assert bool(jnp.allclose(jnp.exp(out2).sum(axis=1), 1.0, atol=1e-3))

    print("KERNEL_OK")
</pallas_src>

<mosaic_0001>
module attributes {stable_mosaic.version = 11 : i64} {
  func.func @_gcn_fused3_kernel(%arg0: i32, %arg1: memref<32x32xbf16, #tpu.memory_space<vmem>>, %arg2: memref<32x128xf32, #tpu.memory_space<vmem>>, %arg3: memref<128x128xf32, #tpu.memory_space<vmem>>, %arg4: memref<1x128xf32, #tpu.memory_space<vmem>>, %arg5: memref<128x128xf32, #tpu.memory_space<vmem>>, %arg6: memref<1x128xf32, #tpu.memory_space<vmem>>, %arg7: memref<128x128xf32, #tpu.memory_space<vmem>>, %arg8: memref<1x128xf32, #tpu.memory_space<vmem>>, %arg9: memref<32x128xf32, #tpu.memory_space<vmem>>) attributes {dimension_semantics = [#tpu.dimension_semantics<arbitrary>], iteration_bounds = array<i64: 1>, scalar_prefetch = 0 : i64, scratch_operands = 0 : i64, tpu.core_type = #tpu.core_type<tc>, window_params = [{pipeline_mode = #tpu.pipeline_mode<synchronous>, transform_indices = @transform_0, window_bounds = array<i64: 32, 32>}, {pipeline_mode = #tpu.pipeline_mode<synchronous>, transform_indices = @transform_1, window_bounds = array<i64: 32, 128>}, {pipeline_mode = #tpu.pipeline_mode<synchronous>, transform_indices = @transform_2, window_bounds = array<i64: 128, 128>}, {pipeline_mode = #tpu.pipeline_mode<synchronous>, transform_indices = @transform_3, window_bounds = array<i64: 1, 128>}, {pipeline_mode = #tpu.pipeline_mode<synchronous>, transform_indices = @transform_4, window_bounds = array<i64: 128, 128>}, {pipeline_mode = #tpu.pipeline_mode<synchronous>, transform_indices = @transform_5, window_bounds = array<i64: 1, 128>}, {pipeline_mode = #tpu.pipeline_mode<synchronous>, transform_indices = @transform_6, window_bounds = array<i64: 128, 128>}, {pipeline_mode = #tpu.pipeline_mode<synchronous>, transform_indices = @transform_7, window_bounds = array<i64: 1, 128>}, {pipeline_mode = #tpu.pipeline_mode<synchronous>, transform_indices = @transform_8, window_bounds = array<i64: 32, 128>}]} {
    %c0 = arith.constant 0 : index
    %c0_0 = arith.constant 0 : index
    %0 = vector.load %arg1[%c0, %c0_0] : memref<32x32xbf16, #tpu.memory_space<vmem>>, vector<32x32xbf16>
    %c0_1 = arith.constant 0 : index
    %c0_2 = arith.constant 0 : index
    %1 = vector.load %arg2[%c0_1, %c0_2] : memref<32x128xf32, #tpu.memory_space<vmem>>, vector<32x128xf32>
    %c0_3 = arith.constant 0 : index
    %c0_4 = arith.constant 0 : index
    %2 = vector.load %arg3[%c0_3, %c0_4] : memref<128x128xf32, #tpu.memory_space<vmem>>, vector<128x128xf32>
    %cst = arith.constant dense<0.000000e+00> : vector<32x128xf32>
    %3 = tpu.matmul %1, %2, %cst {dimension_numbers = #tpu.dot_dimension_numbers<[1], [0], [0], [1], [0, 0, 1, 1], [], []>} : vector<32x128xf32>, vector<128x128xf32>, vector<32x128xf32> -> vector<32x128xf32>
    %4 = arith.truncf %3 : vector<32x128xf32> to vector<32x128xbf16>
    %cst_5 = arith.constant dense<0.000000e+00> : vector<32x128xf32>
    %5 = tpu.matmul %0, %4, %cst_5 {dimension_numbers = #tpu.dot_dimension_numbers<[1], [0], [0], [1], [0, 0, 1, 1], [], []>} : vector<32x32xbf16>, vector<32x128xbf16>, vector<32x128xf32> -> vector<32x128xf32>
    %c0_6 = arith.constant 0 : index
    %c0_7 = arith.constant 0 : index
    %6 = vector.load %arg4[%c0_6, %c0_7] : memref<1x128xf32, #tpu.memory_space<vmem>>, vector<1x128xf32>
    %7 = vector.broadcast %6 : vector<1x128xf32> to vector<32x128xf32>
    %8 = arith.addf %5, %7 : vector<32x128xf32>
    %cst_8 = arith.constant 0.000000e+00 : f32
    %9 = vector.broadcast %cst_8 : f32 to vector<32x128xf32>
    %10 = arith.maximumf %8, %9 : vector<32x128xf32>
    %c0_9 = arith.constant 0 : index
    %c0_10 = arith.constant 0 : index
    %11 = vector.load %arg5[%c0_9, %c0_10] : memref<128x128xf32, #tpu.memory_space<vmem>>, vector<128x128xf32>
    %cst_11 = arith.constant dense<0.000000e+00> : vector<32x128xf32>
    %12 = tpu.matmul %10, %11, %cst_11 {dimension_numbers = #tpu.dot_dimension_numbers<[1], [0], [0], [1], [0, 0, 1, 1], [], []>} : vector<32x128xf32>, vector<128x128xf32>, vector<32x128xf32> -> vector<32x128xf32>
    %13 = arith.truncf %12 : vector<32x128xf32> to vector<32x128xbf16>
    %cst_12 = arith.constant dense<0.000000e+00> : vector<32x128xf32>
    %14 = tpu.matmul %0, %13, %cst_12 {dimension_numbers = #tpu.dot_dimension_numbers<[1], [0], [0], [1], [0, 0, 1, 1], [], []>} : vector<32x32xbf16>, vector<32x128xbf16>, vector<32x128xf32> -> vector<32x128xf32>
    %c0_13 = arith.constant 0 : index
    %c0_14 = arith.constant 0 : index
    %15 = vector.load %arg6[%c0_13, %c0_14] : memref<1x128xf32, #tpu.memory_space<vmem>>, vector<1x128xf32>
    %16 = vector.broadcast %15 : vector<1x128xf32> to vector<32x128xf32>
    %17 = arith.addf %14, %16 : vector<32x128xf32>
    %cst_15 = arith.constant 0.000000e+00 : f32
    %18 = vector.broadcast %cst_15 : f32 to vector<32x128xf32>
    %19 = arith.maximumf %17, %18 : vector<32x128xf32>
    %c0_16 = arith.constant 0 : index
    %c0_17 = arith.constant 0 : index
    %20 = vector.load %arg7[%c0_16, %c0_17] : memref<128x128xf32, #tpu.memory_space<vmem>>, vector<128x128xf32>
    %cst_18 = arith.constant dense<0.000000e+00> : vector<32x128xf32>
    %21 = tpu.matmul %19, %20, %cst_18 {dimension_numbers = #tpu.dot_dimension_numbers<[1], [0], [0], [1], [0, 0, 1, 1], [], []>} : vector<32x128xf32>, vector<128x128xf32>, vector<32x128xf32> -> vector<32x128xf32>
    %22 = arith.truncf %21 : vector<32x128xf32> to vector<32x128xbf16>
    %cst_19 = arith.constant dense<0.000000e+00> : vector<32x128xf32>
    %23 = tpu.matmul %0, %22, %cst_19 {dimension_numbers = #tpu.dot_dimension_numbers<[1], [0], [0], [1], [0, 0, 1, 1], [], []>} : vector<32x32xbf16>, vector<32x128xbf16>, vector<32x128xf32> -> vector<32x128xf32>
    %c0_20 = arith.constant 0 : index
    %c0_21 = arith.constant 0 : index
    %24 = vector.load %arg8[%c0_20, %c0_21] : memref<1x128xf32, #tpu.memory_space<vmem>>, vector<1x128xf32>
    %25 = vector.broadcast %24 : vector<1x128xf32> to vector<32x128xf32>
    %26 = arith.addf %23, %25 : vector<32x128xf32>
    %27 = tpu.iota {dimensions = array<i32: 1>} : vector<32x128xi32>
    %c8_i32 = arith.constant 8 : i32
    %28 = vector.broadcast %c8_i32 : i32 to vector<32x128xi32>
    %29 = arith.cmpi slt, %27, %28 : vector<32x128xi32>
    %cst_22 = arith.constant 0xFF800000 : f32
    %30 = vector.broadcast %cst_22 : f32 to vector<32x128xf32>
    %31 = arith.select %29, %26, %30 : vector<32x128xi1>, vector<32x128xf32>
    %cst_23 = arith.constant dense<0xFF800000> : vector<32xf32>
    %32 = vector.multi_reduction <maximumf>, %31, %cst_23 [1] : vector<32x128xf32> to vector<32xf32>
    %33 = vector.shape_cast %32 : vector<32xf32> to vector<32x1xf32>
    %34 = vector.broadcast %33 : vector<32x1xf32> to vector<32x128xf32>
    %35 = arith.subf %31, %34 : vector<32x128xf32>
    %36 = math.exp %35 : vector<32x128xf32>
    %cst_24 = arith.constant dense<0.000000e+00> : vector<32xf32>
    %37 = vector.multi_reduction <add>, %36, %cst_24 [1] : vector<32x128xf32> to vector<32xf32>
    %38 = vector.shape_cast %37 : vector<32xf32> to vector<32x1xf32>
    %39 = math.log %38 : vector<32x1xf32>
    %40 = vector.broadcast %39 : vector<32x1xf32> to vector<32x128xf32>
    %41 = arith.subf %35, %40 : vector<32x128xf32>
    %c0_25 = arith.constant 0 : index
    %c0_26 = arith.constant 0 : index
    %42 = vector.load %arg9[%c0_25, %c0_26] : memref<32x128xf32, #tpu.memory_space<vmem>>, vector<32x128xf32>
    tpu.vector_store %arg9[%c0_25, %c0_26], %41 {strides = array<i32>} : memref<32x128xf32, #tpu.memory_space<vmem>>, vector<32x128xf32>,
    return
  }
  func.func @transform_0(%arg0: i32) -> (i32, i32) {
    %c0_i32 = arith.constant 0 : i32
    %c0_i32_0 = arith.constant 0 : i32
    %c0_i32_1 = arith.constant 0 : i32
    return %c0_i32, %c0_i32_0 : i32, i32
  }
  func.func @transform_1(%arg0: i32) -> (i32, i32) {
    %c0_i32 = arith.constant 0 : i32
    %c0_i32_0 = arith.constant 0 : i32
    %c0_i32_1 = arith.constant 0 : i32
    return %c0_i32, %c0_i32_0 : i32, i32
  }
  func.func @transform_2(%arg0: i32) -> (i32, i32) {
    %c0_i32 = arith.constant 0 : i32
    %c0_i32_0 = arith.constant 0 : i32
    %c0_i32_1 = arith.constant 0 : i32
    return %c0_i32, %c0_i32_0 : i32, i32
  }
  func.func @transform_3(%arg0: i32) -> (i32, i32) {
    %c0_i32 = arith.constant 0 : i32
    %c0_i32_0 = arith.constant 0 : i32
    %c0_i32_1 = arith.constant 0 : i32
    return %c0_i32, %c0_i32_0 : i32, i32
  }
  func.func @transform_4(%arg0: i32) -> (i32, i32) {
    %c0_i32 = arith.constant 0 : i32
    %c0_i32_0 = arith.constant 0 : i32
    %c0_i32_1 = arith.constant 0 : i32
    return %c0_i32, %c0_i32_0 : i32, i32
  }
  func.func @transform_5(%arg0: i32) -> (i32, i32) {
    %c0_i32 = arith.constant 0 : i32
    %c0_i32_0 = arith.constant 0 : i32
    %c0_i32_1 = arith.constant 0 : i32
    return %c0_i32, %c0_i32_0 : i32, i32
  }
  func.func @transform_6(%arg0: i32) -> (i32, i32) {
    %c0_i32 = arith.constant 0 : i32
    %c0_i32_0 = arith.constant 0 : i32
    %c0_i32_1 = arith.constant 0 : i32
    return %c0_i32, %c0_i32_0 : i32, i32
  }
  func.func @transform_7(%arg0: i32) -> (i32, i32) {
    %c0_i32 = arith.constant 0 : i32
    %c0_i32_0 = arith.constant 0 : i32
    %c0_i32_1 = arith.constant 0 : i32
    return %c0_i32, %c0_i32_0 : i32, i32
  }
  func.func @transform_8(%arg0: i32) -> (i32, i32) {
    %c0_i32 = arith.constant 0 : i32
    %c0_i32_0 = arith.constant 0 : i32
    %c0_i32_1 = arith.constant 0 : i32
    return %c0_i32, %c0_i32_0 : i32, i32
  }
}

</mosaic_0001>

<llo_original>
// kernel: tpu_custom_call.1
$region0: #{tpu_custom_call.1}
  #allocation0 [shape = 'u32[]', space=smem, size = 0x4, offset = 0x4, fixed_abs, tag = 'smem constant byte address 0x4 - core index']
  #allocation1 [shape = 'u32[72,128]{1,0:T(1,128)}', space=vmem, size = 0x9000, scoped, tag = 'internal scratch']
  %s0 = inlined_call_operand.hbm [shape: bf16[32,32], index: 0, kind: input, shape index: {}]
  %s1 = inlined_call_operand.hbm [shape: f32[32,128], index: 1, kind: input, shape index: {}]
  %s2 = inlined_call_operand.hbm [shape: f32[128,128], index: 2, kind: input, shape index: {}]
  %s3 = inlined_call_operand.vmem [shape: f32[1,128], index: 3, kind: input, shape index: {}]
  %s4 = inlined_call_operand.hbm [shape: f32[128,128], index: 4, kind: input, shape index: {}]
  %s5 = inlined_call_operand.vmem [shape: f32[1,128], index: 5, kind: input, shape index: {}]
  %s6 = inlined_call_operand.hbm [shape: f32[128,128], index: 6, kind: input, shape index: {}]
  %s7 = inlined_call_operand.vmem [shape: f32[1,128], index: 7, kind: input, shape index: {}]
  %s8 = inlined_call_operand.hbm [shape: f32[32,128], index: 8, kind: output, shape index: {}]
  %s9 = sld [smem:[#allocation0]]
  $region62: #{tpu_custom_call.1} parent=0
    _
  %s11 = ssub.s32 1, %s9
  %s12 = scalar_select 0, %s11, %s9
  $region1: #{tpu_custom_call.1} parent=0
    #allocation2 [shape = 'u8[8192]{0}', space=vmem, size = 0x2000, scoped, tag = 'input window, operand 0, single buffered']
    #allocation3 [shape = 's32[1]{0}', space=sflag, size = 0x4, scoped, tag = 'scoped memory for tpu_custom_call.1']
    #allocation4 [shape = 's32[1]{0}', space=sflag, size = 0x4, scoped, tag = 'scoped memory for tpu_custom_call.1']
    #allocation5 [shape = 'u8[16384]{0}', space=vmem, size = 0x4000, scoped, tag = 'input window, operand 1, single buffered']
    #allocation6 [shape = 's32[1]{0}', space=sflag, size = 0x4, scoped, tag = 'scoped memory for tpu_custom_call.1']
    #allocation7 [shape = 'u8[65536]{0}', space=vmem, size = 0x10000, scoped, tag = 'input window, operand 2, single buffered']
    #allocation8 [shape = 'u8[65536]{0}', space=vmem, size = 0x10000, scoped, tag = 'input window, operand 4, single buffered']
    #allocation9 [shape = 's32[1]{0}', space=sflag, size = 0x4, scoped, tag = 'scoped memory for tpu_custom_call.1']
    #allocation10 [shape = 'u8[65536]{0}', space=vmem, size = 0x10000, scoped, tag = 'input window, operand 6, single buffered']
    #allocation11 [shape = 'u8[16384]{0}', space=vmem, size = 0x4000, scoped, tag = 'output window, operand 0, single buffered']
    %13 = vsyncpa [#allocation3], 0
    %14 = vsyncpa [#allocation6], 0
    %15 = vsyncpa [#allocation9], 0
    %16 = vsyncpa [#allocation4], 0
    // Predicated region
    $region2: #{tpu_custom_call.1} parent=1 // pred_check
      _
    $region3: #{tpu_custom_call.1} parent=1 // pred_check_branch
      %18 = sbr.rel (0) target = $region5
    $region4: #{tpu_custom_call.1} parent=1 // pred_region
      %20 = vsyncadd [#allocation3], 0
      %s21 = sshll.u32 %s0, 4
      %s22 = int_to_ptr.hbm [resolvable:$true] %s21
      %s23 = sshll.u32 [#allocation2], 4
      %s24 = int_to_ptr.vmem [resolvable:$true] %s23
      %29 = dma.hbm_to_vmem [thread:$0]  %s22, 256, %s24, [#allocation3], 64, 64, 4
    $region5: #{tpu_custom_call.1} parent=1 // pred_fallthru
      _
    // Predicated region
    $region6: #{tpu_custom_call.1} parent=1 // pred_check
      _
    $region7: #{tpu_custom_call.1} parent=1 // pred_check_branch
      %31 = sbr.rel (0) target = $region9
    $region8: #{tpu_custom_call.1} parent=1 // pred_region
      %33 = vsyncadd [#allocation6], 0
      %s34 = sshll.u32 %s1, 4
      %s35 = int_to_ptr.hbm [resolvable:$true] %s34
      %s36 = sshll.u32 [#allocation5], 4
      %s37 = int_to_ptr.vmem [resolvable:$true] %s36
      %42 = dma.hbm_to_vmem [thread:$0]  %s35, 512, %s37, [#allocation6], 128, 128, 8
    $region9: #{tpu_custom_call.1} parent=1 // pred_fallthru
      _
    // Predicated region
    $region10: #{tpu_custom_call.1} parent=1 // pred_check
      _
    $region11: #{tpu_custom_call.1} parent=1 // pred_check_branch
      %44 = sbr.rel (0) target = $region13
    $region12: #{tpu_custom_call.1} parent=1 // pred_region
      %46 = vsyncadd [#allocation6], 0
      %s47 = sshll.u32 %s2, 4
      %s48 = int_to_ptr.hbm [resolvable:$true] %s47
      %s49 = sshll.u32 [#allocation7], 4
      %s50 = int_to_ptr.vmem [resolvable:$true] %s49
      %55 = dma.hbm_to_vmem [thread:$0]  %s48, 2048, %s50, [#allocation6], 128, 128, 8
    $region13: #{tpu_custom_call.1} parent=1 // pred_fallthru
      _
    // Predicated region
    $region14: #{tpu_custom_call.1} parent=1 // pred_check
      _
    $region15: #{tpu_custom_call.1} parent=1 // pred_check_branch
      %57 = sbr.rel (0) target = $region17
    $region16: #{tpu_custom_call.1} parent=1 // pred_region
      _
    $region17: #{tpu_custom_call.1} parent=1 // pred_fallthru
      _
    // Predicated region
    $region18: #{tpu_custom_call.1} parent=1 // pred_check
      _
    $region19: #{tpu_custom_call.1} parent=1 // pred_check_branch
      %59 = sbr.rel (0) target = $region21
    $region20: #{tpu_custom_call.1} parent=1 // pred_region
      %61 = vsyncadd [#allocation9], 0
      %s62 = sshll.u32 %s4, 4
      %s63 = int_to_ptr.hbm [resolvable:$true] %s62
      %s64 = sshll.u32 [#allocation8], 4
      %s65 = int_to_ptr.vmem [resolvable:$true] %s64
      %70 = dma.hbm_to_vmem [thread:$0]  %s63, 2048, %s65, [#allocation9], 128, 128, 8
    $region21: #{tpu_custom_call.1} parent=1 // pred_fallthru
      _
    // Predicated region
    $region22: #{tpu_custom_call.1} parent=1 // pred_check
      _
    $region23: #{tpu_custom_call.1} parent=1 // pred_check_branch
      %72 = sbr.rel (0) target = $region25
    $region24: #{tpu_custom_call.1} parent=1 // pred_region
      _
    $region25: #{tpu_custom_call.1} parent=1 // pred_fallthru
      _
    // Predicated region
    $region26: #{tpu_custom_call.1} parent=1 // pred_check
      _
    $region27: #{tpu_custom_call.1} parent=1 // pred_check_branch
      %74 = sbr.rel (0) target = $region29
    $region28: #{tpu_custom_call.1} parent=1 // pred_region
      %76 = vsyncadd [#allocation9], 0
      %s77 = sshll.u32 %s6, 4
      %s78 = int_to_ptr.hbm [resolvable:$true] %s77
      %s79 = sshll.u32 [#allocation10], 4
      %s80 = int_to_ptr.vmem [resolvable:$true] %s79
      %85 = dma.hbm_to_vmem [thread:$0]  %s78, 2048, %s80, [#allocation9], 128, 128, 8
    $region29: #{tpu_custom_call.1} parent=1 // pred_fallthru
      _
    // Predicated region
    $region30: #{tpu_custom_call.1} parent=1 // pred_check
      _
    $region31: #{tpu_custom_call.1} parent=1 // pred_check_branch
      %87 = sbr.rel (0) target = $region33
    $region32: #{tpu_custom_call.1} parent=1 // pred_region
      _
    $region33: #{tpu_custom_call.1} parent=1 // pred_fallthru
      _
    // Predicated region
    $region34: #{tpu_custom_call.1} parent=1 // pred_check
      _
    $region35: #{tpu_custom_call.1} parent=1 // pred_check_branch
      %89 = sbr.rel (0) target = $region37
    $region36: #{tpu_custom_call.1} parent=1 // pred_region
      %91 = dma.done [#allocation3], 256
    $region37: #{tpu_custom_call.1} parent=1 // pred_fallthru
      _
    // Predicated region
    $region38: #{tpu_custom_call.1} parent=1 // pred_check
      _
    $region39: #{tpu_custom_call.1} parent=1 // pred_check_branch
      %93 = sbr.rel (0) target = $region41
    $region40: #{tpu_custom_call.1} parent=1 // pred_region
      %95 = dma.done [#allocation6], 512
    $region41: #{tpu_custom_call.1} parent=1 // pred_fallthru
      _
    // Predicated region
    $region42: #{tpu_custom_call.1} parent=1 // pred_check
      _
    $region43: #{tpu_custom_call.1} parent=1 // pred_check_branch
      %97 = sbr.rel (0) target = $region45
    $region44: #{tpu_custom_call.1} parent=1 // pred_region
      %99 = dma.done [#allocation6], 2048
    $region45: #{tpu_custom_call.1} parent=1 // pred_fallthru
      _
    // Predicated region
    $region46: #{tpu_custom_call.1} parent=1 // pred_check
      _
    $region47: #{tpu_custom_call.1} parent=1 // pred_check_branch
      %101 = sbr.rel (0) target = $region49
    $region48: #{tpu_custom_call.1} parent=1 // pred_region
      %103 = dma.done [#allocation9], 2048
    $region49: #{tpu_custom_call.1} parent=1 // pred_fallthru
      _
    // Predicated region
    $region50: #{tpu_custom_call.1} parent=1 // pred_check
      _
    $region51: #{tpu_custom_call.1} parent=1 // pred_check_branch
      %105 = sbr.rel (0) target = $region53
    $region52: #{tpu_custom_call.1} parent=1 // pred_region
      %107 = dma.done [#allocation9], 2048
    $region53: #{tpu_custom_call.1} parent=1 // pred_fallthru
      _
    %v109 = vld [vmem:[#allocation2] sm:$0xf]
    %v110 = vld [vmem:[#allocation2 + $0x4] sm:$0xf]
    %v111 = vld [vmem:[#allocation2 + $0x8] sm:$0xf]
    %v112 = vld [vmem:[#allocation2 + $0xc] sm:$0xf]
    %v113 = vld [vmem:[#allocation5] sm:$0xff]
    %v114 = vld [vmem:[#allocation5 + $0x8] sm:$0xff]
    %v115 = vld [vmem:[#allocation5 + $0x10] sm:$0xff]
    %v116 = vld [vmem:[#allocation5 + $0x18] sm:$0xff]
    %v117 = vld [vmem:[#allocation7] sm:$0xff]
    %v118 = vld [vmem:[#allocation7 + $0x8] sm:$0xff]
    %v119 = vld [vmem:[#allocation7 + $0x10] sm:$0xff]
    %v120 = vld [vmem:[#allocation7 + $0x18] sm:$0xff]
    %v121 = vld [vmem:[#allocation7 + $0x20] sm:$0xff]
    %v122 = vld [vmem:[#allocation7 + $0x28] sm:$0xff]
    %v123 = vld [vmem:[#allocation7 + $0x30] sm:$0xff]
    %v124 = vld [vmem:[#allocation7 + $0x38] sm:$0xff]
    %v125 = vld [vmem:[#allocation7 + $0x40] sm:$0xff]
    %v126 = vld [vmem:[#allocation7 + $0x48] sm:$0xff]
    %v127 = vld [vmem:[#allocation7 + $0x50] sm:$0xff]
    %v128 = vld [vmem:[#allocation7 + $0x58] sm:$0xff]
    %v129 = vld [vmem:[#allocation7 + $0x60] sm:$0xff]
    %v130 = vld [vmem:[#allocation7 + $0x68] sm:$0xff]
    %v131 = vld [vmem:[#allocation7 + $0x70] sm:$0xff]
    %v132 = vld [vmem:[#allocation7 + $0x78] sm:$0xff]
    %133 = vmatpush.msra.mxu0 %v132
    %134 = vmatpush.msra.mxu0 %v131
    %135 = vmatpush.msra.mxu0 %v130
    %136 = vmatpush.msra.mxu0 %v129
    %137 = vmatpush.msra.mxu0 %v128
    %138 = vmatpush.msra.mxu0 %v127
    %139 = vmatpush.msra.mxu0 %v126
    %140 = vmatpush.msra.mxu0 %v125
    %141 = vmatpush.msra.mxu0 %v124
    %142 = vmatpush.msra.mxu0 %v123
    %143 = vmatpush.msra.mxu0 %v122
    %144 = vmatpush.msra.mxu0 %v121
    %145 = vmatpush.msra.mxu0 %v120
    %146 = vmatpush.msra.mxu0 %v119
    %147 = vmatpush.msra.mxu0 %v118
    %148 = vmatpush.msra.mxu0 %v117
    %149 = vmatmul.f32.gmra.mxu0 %v113
    %v150 = vpop.f32.mrf.mxu0
    %v151 = vadd.f32 0.0, %v150
    %152 = vmatmul.f32.gmra.mxu0 %v114
    %v153 = vpop.f32.mrf.mxu0
    %v154 = vadd.f32 0.0, %v153
    %155 = vmatmul.f32.gmra.mxu0 %v115
    %v156 = vpop.f32.mrf.mxu0
    %v157 = vadd.f32 0.0, %v156
    %158 = vmatmul.f32.gmra.mxu0 %v116
    %v159 = vpop.f32.mrf.mxu0
    %v160 = vadd.f32 0.0, %v159
    %161 = vdwg.mxu0
    %v162 = vpack.c.bf16 %v154, %v151
    %v163 = vpack.c.bf16 %v160, %v157
    %v164 = vld [vmem:[%s3] sm:$0x1]
    %v166 = vperm.slane %v164, 0
    %v172 = vunpack.c.l.b16 %v109
    %v173 = vunpack.c.l.b16 %v110
    %v174 = vunpack.c.l.b16 %v111
    %v175 = vunpack.c.l.b16 %v112
    %v176 = vpack.c.b16 %v173, %v172
    %v177 = vpack.c.b16 %v175, %v174
    %vm178 = vcmask 261120
    %v180 = vsel %vm178, %v176, 0
    %v183 = vsel %vm178, %v177, 0
    %185 = vmatpush.bf16.msra.mxu0 0
    %186 = vmatpush.bf16.msra.mxu0 0
    %187 = vmatpush.bf16.msra.mxu0 0
    %188 = vmatpush.bf16.msra.mxu0 0
    %189 = vmatpush.bf16.msra.mxu0 0
    %190 = vmatpush.bf16.msra.mxu0 0
    %191 = vmatpush.bf16.msra.mxu0 %v163
    %192 = vmatpush.bf16.msra.mxu0 %v162
    %193 = vmatmul.bf16.gmra.mxu0 %v180
    %v194 = vpop.f32.mrf.mxu0
    %v195 = vadd.f32 %v166, %v194
    %v196 = vpop.f32.mrf.mxu0
    %v197 = vadd.f32 %v166, %v196
    %198 = vmatmul.bf16.gmra.mxu0 %v183
    %v199 = vpop.f32.mrf.mxu0
    %v200 = vadd.f32 %v166, %v199
    %v201 = vpop.f32.mrf.mxu0
    %v202 = vadd.f32 %v166, %v201
    %203 = vdwg.mxu0
    %v204 = vmax.f32 %v195, 0.0
    %v205 = vmax.f32 %v197, 0.0
    %v206 = vmax.f32 %v200, 0.0
    %v207 = vmax.f32 %v202, 0.0
    %v208 = vld [vmem:[#allocation8] sm:$0xff]
    %v209 = vld [vmem:[#allocation8 + $0x8] sm:$0xff]
    %v210 = vld [vmem:[#allocation8 + $0x10] sm:$0xff]
    %v211 = vld [vmem:[#allocation8 + $0x18] sm:$0xff]
    %v212 = vld [vmem:[#allocation8 + $0x20] sm:$0xff]
    %v213 = vld [vmem:[#allocation8 + $0x28] sm:$0xff]
    %v214 = vld [vmem:[#allocation8 + $0x30] sm:$0xff]
    %v215 = vld [vmem:[#allocation8 + $0x38] sm:$0xff]
    %v216 = vld [vmem:[#allocation8 + $0x40] sm:$0xff]
    %v217 = vld [vmem:[#allocation8 + $0x48] sm:$0xff]
    %v218 = vld [vmem:[#allocation8 + $0x50] sm:$0xff]
    %v219 = vld [vmem:[#allocation8 + $0x58] sm:$0xff]
    %v220 = vld [vmem:[#allocation8 + $0x60] sm:$0xff]
    %v221 = vld [vmem:[#allocation8 + $0x68] sm:$0xff]
    %v222 = vld [vmem:[#allocation8 + $0x70] sm:$0xff]
    %v223 = vld [vmem:[#allocation8 + $0x78] sm:$0xff]
    %224 = vmatpush.msra.mxu0 %v223
    %225 = vmatpush.msra.mxu0 %v222
    %226 = vmatpush.msra.mxu0 %v221
    %227 = vmatpush.msra.mxu0 %v220
    %228 = vmatpush.msra.mxu0 %v219
    %229 = vmatpush.msra.mxu0 %v218
    %230 = vmatpush.msra.mxu0 %v217
    %231 = vmatpush.msra.mxu0 %v216
    %232 = vmatpush.msra.mxu0 %v215
    %233 = vmatpush.msra.mxu0 %v214
    %234 = vmatpush.msra.mxu0 %v213
    %235 = vmatpush.msra.mxu0 %v212
    %236 = vmatpush.msra.mxu0 %v211
    %237 = vmatpush.msra.mxu0 %v210
    %238 = vmatpush.msra.mxu0 %v209
    %239 = vmatpush.msra.mxu0 %v208
    %240 = vmatmul.f32.gmra.mxu0 %v204
    %v241 = vpop.f32.mrf.mxu0
    %v242 = vadd.f32 0.0, %v241
    %243 = vmatmul.f32.gmra.mxu0 %v205
    %v244 = vpop.f32.mrf.mxu0
    %v245 = vadd.f32 0.0, %v244
    %246 = vmatmul.f32.gmra.mxu0 %v206
    %v247 = vpop.f32.mrf.mxu0
    %v248 = vadd.f32 0.0, %v247
    %249 = vmatmul.f32.gmra.mxu0 %v207
    %v250 = vpop.f32.mrf.mxu0
    %v251 = vadd.f32 0.0, %v250
    %252 = vdwg.mxu0
    %v253 = vpack.c.bf16 %v245, %v242
    %v254 = vpack.c.bf16 %v251, %v248
    %v255 = vld [vmem:[%s5] sm:$0x1]
    %v257 = vperm.slane %v255, 0
    %259 = vmatpush.bf16.msra.mxu0 0
    %260 = vmatpush.bf16.msra.mxu0 0
    %261 = vmatpush.bf16.msra.mxu0 0
    %262 = vmatpush.bf16.msra.mxu0 0
    %263 = vmatpush.bf16.msra.mxu0 0
    %264 = vmatpush.bf16.msra.mxu0 0
    %265 = vmatpush.bf16.msra.mxu0 %v254
    %266 = vmatpush.bf16.msra.mxu0 %v253
    %267 = vmatmul.bf16.gmra.mxu0 %v180
    %v268 = vpop.f32.mrf.mxu0
    %v269 = vadd.f32 %v257, %v268
    %v270 = vpop.f32.mrf.mxu0
    %v271 = vadd.f32 %v257, %v270
    %272 = vmatmul.bf16.gmra.mxu0 %v183
    %v273 = vpop.f32.mrf.mxu0
    %v274 = vadd.f32 %v257, %v273
    %v275 = vpop.f32.mrf.mxu0
    %v276 = vadd.f32 %v257, %v275
    %277 = vdwg.mxu0
    %v278 = vmax.f32 %v269, 0.0
    %v279 = vmax.f32 %v271, 0.0
    %v280 = vmax.f32 %v274, 0.0
    %v281 = vmax.f32 %v276, 0.0
    %v282 = vld [vmem:[#allocation10] sm:$0xff]
    %v283 = vld [vmem:[#allocation10 + $0x8] sm:$0xff]
    %v284 = vld [vmem:[#allocation10 + $0x10] sm:$0xff]
    %v285 = vld [vmem:[#allocation10 + $0x18] sm:$0xff]
    %v286 = vld [vmem:[#allocation10 + $0x20] sm:$0xff]
    %v287 = vld [vmem:[#allocation10 + $0x28] sm:$0xff]
    %v288 = vld [vmem:[#allocation10 + $0x30] sm:$0xff]
    %v289 = vld [vmem:[#allocation10 + $0x38] sm:$0xff]
    %v290 = vld [vmem:[#allocation10 + $0x40] sm:$0xff]
    %v291 = vld [vmem:[#allocation10 + $0x48] sm:$0xff]
    %v292 = vld [vmem:[#allocation10 + $0x50] sm:$0xff]
    %v293 = vld [vmem:[#allocation10 + $0x58] sm:$0xff]
    %v294 = vld [vmem:[#allocation10 + $0x60] sm:$0xff]
    %v295 = vld [vmem:[#allocation10 + $0x68] sm:$0xff]
    %v296 = vld [vmem:[#allocation10 + $0x70] sm:$0xff]
    %v297 = vld [vmem:[#allocation10 + $0x78] sm:$0xff]
    %298 = vmatpush.msra.mxu0 %v297
    %299 = vmatpush.msra.mxu0 %v296
    %300 = vmatpush.msra.mxu0 %v295
    %301 = vmatpush.msra.mxu0 %v294
    %302 = vmatpush.msra.mxu0 %v293
    %303 = vmatpush.msra.mxu0 %v292
    %304 = vmatpush.msra.mxu0 %v291
    %305 = vmatpush.msra.mxu0 %v290
    %306 = vmatpush.msra.mxu0 %v289
    %307 = vmatpush.msra.mxu0 %v288
    %308 = vmatpush.msra.mxu0 %v287
    %309 = vmatpush.msra.mxu0 %v286
    %310 = vmatpush.msra.mxu0 %v285
    %311 = vmatpush.msra.mxu0 %v284
    %312 = vmatpush.msra.mxu0 %v283
    %313 = vmatpush.msra.mxu0 %v282
    %314 = vmatmul.f32.gmra.mxu0 %v278
    %v315 = vpop.f32.mrf.mxu0
    %v316 = vadd.f32 0.0, %v315
    %317 = vmatmul.f32.gmra.mxu0 %v279
    %v318 = vpop.f32.mrf.mxu0
    %v319 = vadd.f32 0.0, %v318
    %320 = vmatmul.f32.gmra.mxu0 %v280
    %v321 = vpop.f32.mrf.mxu0
    %v322 = vadd.f32 0.0, %v321
    %323 = vmatmul.f32.gmra.mxu0 %v281
    %v324 = vpop.f32.mrf.mxu0
    %v325 = vadd.f32 0.0, %v324
    %326 = vdwg.mxu0
    %v327 = vpack.c.bf16 %v319, %v316
    %v328 = vpack.c.bf16 %v325, %v322
    %v329 = vld [vmem:[%s7] sm:$0x1]
    %v331 = vperm.slane %v329, 0
    %333 = vmatpush.bf16.msra.mxu0 0
    %334 = vmatpush.bf16.msra.mxu0 0
    %335 = vmatpush.bf16.msra.mxu0 0
    %336 = vmatpush.bf16.msra.mxu0 0
    %337 = vmatpush.bf16.msra.mxu0 0
    %338 = vmatpush.bf16.msra.mxu0 0
    %339 = vmatpush.bf16.msra.mxu0 %v328
    %340 = vmatpush.bf16.msra.mxu0 %v327
    %341 = vmatmul.bf16.gmra.mxu0 %v180
    %v342 = vpop.f32.mrf.mxu0
    %v343 = vadd.f32 %v331, %v342
    %v344 = vpop.f32.mrf.mxu0
    %v345 = vadd.f32 %v331, %v344
    %346 = vmatmul.bf16.gmra.mxu0 %v183
    %v347 = vpop.f32.mrf.mxu0
    %v348 = vadd.f32 %v331, %v347
    %v349 = vpop.f32.mrf.mxu0
    %v350 = vadd.f32 %v331, %v349
    %351 = vdwg.mxu0
    %v352 = vlaneseq
    %v353 = vand.u32 %v352, 127
    %vm354 = vcmp.lt.s32.totalorder %v353, 8
    %v355 = vsel %vm354, %v343, -inf
    %v356 = vsel %vm354, %v345, -inf
    %v357 = vsel %vm354, %v348, -inf
    %v358 = vsel %vm354, %v350, -inf
    %359 = vmax.xlane.f32.xlu0 %v355
    %v360 = vpop.xlane.xlu0 %359
    %361 = vmax.xlane.f32.xlu0 %v356
    %v362 = vpop.xlane.xlu0 %361
    %363 = vmax.xlane.f32.xlu0 %v357
    %v364 = vpop.xlane.xlu0 %363
    %365 = vmax.xlane.f32.xlu0 %v358
    %v366 = vpop.xlane.xlu0 %365
    %v367 = vsub.f32 %v355, %v360
    %v368 = vsub.f32 %v356, %v362
    %v369 = vsub.f32 %v357, %v364
    %v370 = vsub.f32 %v358, %v366
    %v371 = vmul.f32 %v367, 1.442695
    %v372 = vpow.pop %v371
    %v373 = vmul.f32 %v368, 1.442695
    %v374 = vpow.pop %v373
    %v375 = vmul.f32 %v369, 1.442695
    %v376 = vpow.pop %v375
    %v377 = vmul.f32 %v370, 1.442695
    %v378 = vpow.pop %v377
    %379 = vadd.xlane.f32.xlu0 %v372
    %v380 = vpop.xlane.xlu0 %379
    %381 = vadd.xlane.f32.xlu0 %v374
    %v382 = vpop.xlane.xlu0 %381
    %383 = vadd.xlane.f32.xlu0 %v376
    %v384 = vpop.xlane.xlu0 %383
    %385 = vadd.xlane.f32.xlu0 %v378
    %v386 = vpop.xlane.xlu0 %385
    %v387 = vlog2.pop %v380
    %v388 = vmul.f32 %v387, 0.6931472
    %v389 = vlog2.pop %v382
    %v390 = vmul.f32 %v389, 0.6931472
    %v391 = vlog2.pop %v384
    %v392 = vmul.f32 %v391, 0.6931472
    %v393 = vlog2.pop %v386
    %v394 = vmul.f32 %v393, 0.6931472
    %v395 = vsub.f32 %v367, %v388
    %v396 = vsub.f32 %v368, %v390
    %v397 = vsub.f32 %v369, %v392
    %v398 = vsub.f32 %v370, %v394
    %399 = vst [vmem:[#allocation11] sm:$0xff] %v395
    %400 = vst [vmem:[#allocation11 + $0x8] sm:$0xff] %v396
    %401 = vst [vmem:[#allocation11 + $0x10] sm:$0xff] %v397
    %402 = vst [vmem:[#allocation11 + $0x18] sm:$0xff] %v398
    // Predicated region
    $region54: #{tpu_custom_call.1} parent=1 // pred_check
      _
    $region55: #{tpu_custom_call.1} parent=1 // pred_check_branch
      %404 = sbr.rel (0) target = $region57
    $region56: #{tpu_custom_call.1} parent=1 // pred_region
      %406 = vsyncadd [#allocation4], 0
      %s407 = sshll.u32 [#allocation11], 4
      %s408 = int_to_ptr.vmem [resolvable:$true] %s407
      %s409 = sshll.u32 %s8, 4
      %s410 = int_to_ptr.hbm [resolvable:$true] %s409
      %415 = dma.vmem_to_hbm [thread:$0]  %s408, 512, %s410, [#allocation4], 128, 128, 8
    $region57: #{tpu_custom_call.1} parent=1 // pred_fallthru
      _
    // Predicated region
    $region58: #{tpu_custom_call.1} parent=1 // pred_check
      _
    $region59: #{tpu_custom_call.1} parent=1 // pred_check_branch
      %417 = sbr.rel (0) target = $region61
    $region60: #{tpu_custom_call.1} parent=1 // pred_region
      %419 = dma.done [#allocation4], 512
    $region61: #{tpu_custom_call.1} parent=1 // pred_fallthru
      _
    %420 = vsyncpa [#allocation3], 1
    %421 = vsyncpa [#allocation6], 1
    %422 = vsyncpa [#allocation9], 1
    %423 = vsyncpa [#allocation4], 1

</llo_original>
